<compile_context>
chip_gen: v6e
topology: v6e:2x2x1
jax: 0.10.0
libtpu: 0.0.40
codegen_flags: <defaults>
</compile_context>

<pallas_src>
import functools
import math

import jax
import jax.numpy as jnp
from jax.experimental import pallas as pl
from jax.experimental.pallas import tpu as pltpu


# ------------------------------ helpers ------------------------------------ #
def _round_up(x, m):
    return ((x + m - 1) // m) * m


def _row_tiling(B, L):
    """Row layout of the fused slab: B*L sequence rows, then B xc rows, padded."""
    R = B * L + B
    if R <= 1024:
        row_block = _round_up(R, 8)      # single grid step at toy sizes
    else:
        row_block = 512                  # sized for v7x 64 MiB VMEM; weights resident
    R_pad = _round_up(R, row_block)
    return R, row_block, R_pad


def get_pos(L, nh):
    # Mirrors InputFeature.getPos: pos = arange(91) - 45, interleaved sin/cos.
    assert L == 91, "getPos semantics require sequence length 91"
    pos = jnp.arange(91, dtype=jnp.float32) - 45.0                     # (91,)
    i = jnp.arange(nh // 2, dtype=jnp.float32)                         # (nh/2,)
    ang = pos[:, None] / (i[None, :] + 1.0) * jnp.pi                   # (91, nh/2)
    return jnp.stack([jnp.sin(ang), jnp.cos(ang)], axis=-1).reshape(91, nh)


def init_linear(key, n_in, n_out):
    # Deterministic synthetic init (PyTorch-Linear-style uniform bounds).
    k1, k2 = jax.random.split(key)
    bound = 1.0 / math.sqrt(n_in)
    w = jax.random.uniform(k1, (n_in, n_out), jnp.float32, -bound, bound)
    b = jax.random.uniform(k2, (1, n_out), jnp.float32, -bound, bound)
    return w, b


# ------------------------------ Pallas kernel ------------------------------ #
def _input_feature_kernel(x_ref, w1_ref, w2_ref, bias_ref, o_ref):
    # Two MXU matmuls + one full-tile VPU add + one contiguous 128-lane store.
    h = jnp.maximum(
        jnp.dot(x_ref[...], w1_ref[...], preferred_element_type=jnp.float32),
        0.0)
    o_ref[...] = (jnp.dot(h, w2_ref[...], preferred_element_type=jnp.float32)
                  + bias_ref[...])


# ------------------------------ params ------------------------------------- #
def init_params(key, nTup, nxc, nh, B, L=91):
    """Builds fused kernel params (block-diag weights, folded biases/pos) + raw."""
    assert nh % 2 == 0
    keys = jax.random.split(key, 2 * (len(nTup) + 1))
    raw = {"branches": [], "xc": None}
    for k, n in enumerate(nTup):
        w1, b1 = init_linear(keys[2 * k], n, nh)
        w2, b2 = init_linear(keys[2 * k + 1], nh, nh)
        raw["branches"].append((w1, b1, w2, b2))
    w1c, b1c = init_linear(keys[-2], nxc, nh)
    w2c, b2c = init_linear(keys[-1], nh, nh)
    raw["xc"] = (w1c, b1c, w2c, b2c)

    K = len(nTup)
    n_tot = sum(nTup)
    F = n_tot + nxc + 1                  # +1: constant-1 column carries layer-1 biases
    W = (K + 1) * nh                     # K sequence blocks + 1 xc block
    W_pad = _round_up(W, 128)            # lane-dense, unmasked stores
    R, _, R_pad = _row_tiling(B, L)

    P = get_pos(L, nh)                   # (L, nh), batch-invariant

    w1_full = jnp.zeros((F, W_pad), jnp.float32)
    w2_full = jnp.zeros((W_pad, W_pad), jnp.float32)
    bias_full = jnp.zeros((R_pad, W_pad), jnp.float32)

    r = 0
    for k, (w1, b1, w2, b2) in enumerate(raw["branches"]):
        n = w1.shape[0]
        c = k * nh
        w1_full = w1_full.at[r:r + n, c:c + nh].set(w1)
        w1_full = w1_full.at[F - 1, c:c + nh].set(b1[0])          # fold b1
        w2_full = w2_full.at[c:c + nh, c:c + nh].set(w2)
        # fold pos + b2, pre-tiled over all B*L sequence rows
        seq_bias = jnp.broadcast_to((P + b2)[None], (B, L, nh)).reshape(B * L, nh)
        bias_full = bias_full.at[:B * L, c:c + nh].set(seq_bias)
        r += n

    c = K * nh
    w1_full = w1_full.at[n_tot:n_tot + nxc, c:c + nh].set(w1c)
    w1_full = w1_full.at[F - 1, c:c + nh].set(b1c[0])
    w2_full = w2_full.at[c:c + nh, c:c + nh].set(w2c)
    bias_full = bias_full.at[B * L:B * L + B, c:c + nh].set(
        jnp.broadcast_to(b2c, (B, nh)))

    fused = {"w1": w1_full, "w2": w2_full, "bias": bias_full}
    return fused, raw


# ------------------------------ forward ------------------------------------- #
@functools.partial(jax.jit, static_argnames=("nh",))
def input_feature_forward(params, xTup, xc, *, nh):
    B, L = xTup[0].shape[0], xTup[0].shape[1]
    K = len(xTup)
    nxc = xc.shape[-1]
    n_tot = sum(x.shape[-1] for x in xTup)
    F = n_tot + nxc + 1
    W_pad = params["w1"].shape[1]
    R, row_block, R_pad = _row_tiling(B, L)

    # Fused input slab: rows = [seq rows (b,l row-major) | xc rows | pad],
    # features = [seq feats | xc feats | 1.0].
    x_seq = jnp.concatenate(
        [x.reshape(B * L, x.shape[-1]) for x in xTup]
        + [jnp.zeros((B * L, nxc), jnp.float32),
           jnp.ones((B * L, 1), jnp.float32)], axis=-1)
    x_c = jnp.concatenate(
        [jnp.zeros((B, n_tot), jnp.float32), xc.astype(jnp.float32),
         jnp.ones((B, 1), jnp.float32)], axis=-1)
    x_full = jnp.concatenate([x_seq, x_c], axis=0)
    if R_pad > R:
        x_full = jnp.concatenate(
            [x_full, jnp.zeros((R_pad - R, F), jnp.float32)], axis=0)

    slab = pl.pallas_call(
        _input_feature_kernel,
        out_shape=jax.ShapeDtypeStruct((R_pad, W_pad), jnp.float32),
        grid_spec=pltpu.PrefetchScalarGridSpec(
            num_scalar_prefetch=0,
            grid=(R_pad // row_block,),
            in_specs=[
                pl.BlockSpec((row_block, F), lambda i: (i, 0)),
                pl.BlockSpec((F, W_pad), lambda i: (0, 0)),       # resident weights
                pl.BlockSpec((W_pad, W_pad), lambda i: (0, 0)),   # resident weights
                pl.BlockSpec((row_block, W_pad), lambda i: (i, 0)),
            ],
            out_specs=pl.BlockSpec((row_block, W_pad), lambda i: (i, 0)),
        ),
        compiler_params=pltpu.CompilerParams(
            dimension_semantics=("parallel",)),
    )(x_full, params["w1"], params["w2"], params["bias"])

    # Wrapper-side layout plumbing (fuses into the consumer):
    # (B*L, K*nh) slab -> (B, K*L, nh), plus the B xc rows.
    seq = slab[:B * L, :K * nh].reshape(B, L, K, nh)
    seq = seq.transpose(0, 2, 1, 3).reshape(B, K * L, nh)
    yc = slab[B * L:B * L + B, K * nh:(K + 1) * nh]
    return jnp.concatenate([seq, yc[:, None, :]], axis=1)


# ------------------------------ reference ----------------------------------- #
def reference_forward(raw, xTup, xc, nh):
    """Pure-JAX reference matching the PyTorch module (per-branch, unfused)."""
    hp = jax.lax.Precision.HIGHEST
    P = get_pos(xTup[0].shape[1], nh)
    outs = []
    for (w1, b1, w2, b2), x in zip(raw["branches"], xTup):
        h = jnp.maximum(jnp.einsum("bln,nh->blh", x, w1, precision=hp) + b1, 0.0)
        y = jnp.einsum("blh,hk->blk", h, w2, precision=hp) + b2 + P[None]
        outs.append(y)
    w1c, b1c, w2c, b2c = raw["xc"]
    hc = jnp.maximum(jnp.dot(xc, w1c, precision=hp) + b1c, 0.0)
    yc = jnp.dot(hc, w2c, precision=hp) + b2c
    return jnp.concatenate(outs + [yc[:, None, :]], axis=1)


# ---------------------------------- Main ------------------------------------ #
if __name__ == "__main__":
    nTup = (3, 5)     # per-branch input feature sizes
    nxc = 4
    nh = 32
    B = 2
    L = 91            # fixed by getPos semantics

    root = jax.random.PRNGKey(0)
    kp, kx0, kx1, kxc = jax.random.split(root, 4)

    params, raw = init_params(kp, nTup, nxc, nh, B, L)
    xTup = (
        jax.random.normal(kx0, (B, L, nTup[0]), jnp.float32),
        jax.random.normal(kx1, (B, L, nTup[1]), jnp.float32),
    )
    xc = jax.random.normal(kxc, (B, nxc), jnp.float32)

    out = jax.block_until_ready(input_feature_forward(params, xTup, xc, nh=nh))
    assert out.shape == (B, len(nTup) * L + 1, nh), out.shape

    ref = jax.block_until_ready(reference_forward(raw, xTup, xc, nh))
    max_err = float(jnp.max(jnp.abs(out - ref)))
    assert max_err < 1e-3, f"max abs error {max_err}"

    print("KERNEL_OK")
</pallas_src>

<mosaic_0001>
module attributes {stable_mosaic.version = 11 : i64} {
  func.func @_input_feature_kernel(%arg0: i32, %arg1: memref<184x13xf32, #tpu.memory_space<vmem>>, %arg2: memref<13x128xf32, #tpu.memory_space<vmem>>, %arg3: memref<128x128xf32, #tpu.memory_space<vmem>>, %arg4: memref<184x128xf32, #tpu.memory_space<vmem>>, %arg5: memref<184x128xf32, #tpu.memory_space<vmem>>) attributes {dimension_semantics = [#tpu.dimension_semantics<parallel>], iteration_bounds = array<i64: 1>, scalar_prefetch = 0 : i64, scratch_operands = 0 : i64, tpu.core_type = #tpu.core_type<tc>, window_params = [{transform_indices = @transform_0, window_bounds = array<i64: 184, 13>}, {pipeline_mode = #tpu.pipeline_mode<synchronous>, transform_indices = @transform_1, window_bounds = array<i64: 13, 128>}, {pipeline_mode = #tpu.pipeline_mode<synchronous>, transform_indices = @transform_2, window_bounds = array<i64: 128, 128>}, {transform_indices = @transform_3, window_bounds = array<i64: 184, 128>}, {transform_indices = @transform_4, window_bounds = array<i64: 184, 128>}]} {
    %c0 = arith.constant 0 : index
    %c0_0 = arith.constant 0 : index
    %0 = vector.load %arg1[%c0, %c0_0] : memref<184x13xf32, #tpu.memory_space<vmem>>, vector<184x13xf32>
    %c0_1 = arith.constant 0 : index
    %c0_2 = arith.constant 0 : index
    %1 = vector.load %arg2[%c0_1, %c0_2] : memref<13x128xf32, #tpu.memory_space<vmem>>, vector<13x128xf32>
    %cst = arith.constant dense<0.000000e+00> : vector<184x128xf32>
    %2 = tpu.matmul %0, %1, %cst {dimension_numbers = #tpu.dot_dimension_numbers<[1], [0], [0], [1], [0, 0, 1, 1], [], []>} : vector<184x13xf32>, vector<13x128xf32>, vector<184x128xf32> -> vector<184x128xf32>
    %cst_3 = arith.constant 0.000000e+00 : f32
    %3 = vector.broadcast %cst_3 : f32 to vector<184x128xf32>
    %4 = arith.maximumf %2, %3 : vector<184x128xf32>
    %c0_4 = arith.constant 0 : index
    %c0_5 = arith.constant 0 : index
    %5 = vector.load %arg3[%c0_4, %c0_5] : memref<128x128xf32, #tpu.memory_space<vmem>>, vector<128x128xf32>
    %cst_6 = arith.constant dense<0.000000e+00> : vector<184x128xf32>
    %6 = tpu.matmul %4, %5, %cst_6 {dimension_numbers = #tpu.dot_dimension_numbers<[1], [0], [0], [1], [0, 0, 1, 1], [], []>} : vector<184x128xf32>, vector<128x128xf32>, vector<184x128xf32> -> vector<184x128xf32>
    %c0_7 = arith.constant 0 : index
    %c0_8 = arith.constant 0 : index
    %7 = vector.load %arg4[%c0_7, %c0_8] : memref<184x128xf32, #tpu.memory_space<vmem>>, vector<184x128xf32>
    %8 = arith.addf %6, %7 : vector<184x128xf32>
    %c0_9 = arith.constant 0 : index
    %c0_10 = arith.constant 0 : index
    %9 = vector.load %arg5[%c0_9, %c0_10] : memref<184x128xf32, #tpu.memory_space<vmem>>, vector<184x128xf32>
    tpu.vector_store %arg5[%c0_9, %c0_10], %8 {strides = array<i32>} : memref<184x128xf32, #tpu.memory_space<vmem>>, vector<184x128xf32>,
    return
  }
  func.func @transform_0(%arg0: i32) -> (i32, i32) {
    %c0_i32 = arith.constant 0 : i32
    %c0_i32_0 = arith.constant 0 : i32
    return %arg0, %c0_i32 : i32, i32
  }
  func.func @transform_1(%arg0: i32) -> (i32, i32) {
    %c0_i32 = arith.constant 0 : i32
    %c0_i32_0 = arith.constant 0 : i32
    %c0_i32_1 = arith.constant 0 : i32
    return %c0_i32, %c0_i32_0 : i32, i32
  }
  func.func @transform_2(%arg0: i32) -> (i32, i32) {
    %c0_i32 = arith.constant 0 : i32
    %c0_i32_0 = arith.constant 0 : i32
    %c0_i32_1 = arith.constant 0 : i32
    return %c0_i32, %c0_i32_0 : i32, i32
  }
  func.func @transform_3(%arg0: i32) -> (i32, i32) {
    %c0_i32 = arith.constant 0 : i32
    %c0_i32_0 = arith.constant 0 : i32
    return %arg0, %c0_i32 : i32, i32
  }
  func.func @transform_4(%arg0: i32) -> (i32, i32) {
    %c0_i32 = arith.constant 0 : i32
    %c0_i32_0 = arith.constant 0 : i32
    return %arg0, %c0_i32 : i32, i32
  }
}

</mosaic_0001>

<llo_original>
// kernel: input_feature_forward.1
$region0: #{input_feature_forward.1}
  #allocation0 [shape = 'u32[]', space=smem, size = 0x4, offset = 0x4, fixed_abs, tag = 'smem constant byte address 0x4 - core index']
  #allocation1 [shape = 'u32[144,128]{1,0:T(1,128)}', space=vmem, size = 0x12000, scoped, tag = 'internal scratch']
  %s0 = inlined_call_operand.vmem [shape: f32[184,13], index: 0, kind: input, shape index: {}]
  %s1 = inlined_call_operand.vmem [shape: f32[13,128], index: 1, kind: input, shape index: {}]
  %s2 = inlined_call_operand.vmem [shape: f32[128,128], index: 2, kind: input, shape index: {}]
  %s3 = inlined_call_operand.vmem [shape: f32[184,128], index: 3, kind: input, shape index: {}]
  %s4 = inlined_call_operand.vmem [shape: f32[184,128], index: 4, kind: output, shape index: {}]
  %s5 = sld [smem:[#allocation0]]
  $region26: #{input_feature_forward.1} parent=0
    _
  %s7 = ssub.s32 1, %s5
  %s8 = scalar_select 0, %s7, %s5
  // Predicated region
  $region2: #{input_feature_forward.1} parent=0 // pred_check
    _
  $region3: #{input_feature_forward.1} parent=0 // pred_check_branch
    %10 = sbr.rel (0) target = $region5
  $region4: #{input_feature_forward.1} parent=0 // pred_region
    _
  $region5: #{input_feature_forward.1} parent=0 // pred_fallthru
    _
  // Predicated region
  $region6: #{input_feature_forward.1} parent=0 // pred_check
    _
  $region7: #{input_feature_forward.1} parent=0 // pred_check_branch
    %12 = sbr.rel (0) target = $region9
  $region8: #{input_feature_forward.1} parent=0 // pred_region
    _
  $region9: #{input_feature_forward.1} parent=0 // pred_fallthru
    _
  // Predicated region
  $region10: #{input_feature_forward.1} parent=0 // pred_check
    _
  $region11: #{input_feature_forward.1} parent=0 // pred_check_branch
    %14 = sbr.rel (0) target = $region13
  $region12: #{input_feature_forward.1} parent=0 // pred_region
    _
  $region13: #{input_feature_forward.1} parent=0 // pred_fallthru
    _
  // Predicated region
  $region14: #{input_feature_forward.1} parent=0 // pred_check
    _
  $region15: #{input_feature_forward.1} parent=0 // pred_check_branch
    %16 = sbr.rel (0) target = $region17
  $region16: #{input_feature_forward.1} parent=0 // pred_region
    _
  $region17: #{input_feature_forward.1} parent=0 // pred_fallthru
    _
  %v17 = vld [vmem:[%s0] sm:$0xff]
  %v18 = vld [vmem:[%s0 + $0x8] sm:$0xff]
  %v19 = vld [vmem:[%s0 + $0x10] sm:$0xff]
  %v20 = vld [vmem:[%s0 + $0x18] sm:$0xff]
  %v21 = vld [vmem:[%s0 + $0x20] sm:$0xff]
  %v22 = vld [vmem:[%s0 + $0x28] sm:$0xff]
  %v23 = vld [vmem:[%s0 + $0x30] sm:$0xff]
  %v24 = vld [vmem:[%s0 + $0x38] sm:$0xff]
  %v25 = vld [vmem:[%s0 + $0x40] sm:$0xff]
  %v26 = vld [vmem:[%s0 + $0x48] sm:$0xff]
  %v27 = vld [vmem:[%s0 + $0x50] sm:$0xff]
  %v28 = vld [vmem:[%s0 + $0x58] sm:$0xff]
  %v29 = vld [vmem:[%s0 + $0x60] sm:$0xff]
  %v30 = vld [vmem:[%s0 + $0x68] sm:$0xff]
  %v31 = vld [vmem:[%s0 + $0x70] sm:$0xff]
  %v32 = vld [vmem:[%s0 + $0x78] sm:$0xff]
  %v33 = vld [vmem:[%s0 + $0x80] sm:$0xff]
  %v34 = vld [vmem:[%s0 + $0x88] sm:$0xff]
  %v35 = vld [vmem:[%s0 + $0x90] sm:$0xff]
  %v36 = vld [vmem:[%s0 + $0x98] sm:$0xff]
  %v37 = vld [vmem:[%s0 + $0xa0] sm:$0xff]
  %v38 = vld [vmem:[%s0 + $0xa8] sm:$0xff]
  %v39 = vld [vmem:[%s0 + $0xb0] sm:$0xff]
  %v40 = vld [vmem:[%s1] sm:$0xff]
  %v41 = vld [vmem:[%s1 + $0x8] sm:$0x1f]
  %vm42 = vcmask 105472
  %v44 = vsel %vm42, %v17, 0
  %v47 = vsel %vm42, %v18, 0
  %v50 = vsel %vm42, %v19, 0
  %v53 = vsel %vm42, %v20, 0
  %v56 = vsel %vm42, %v21, 0
  %v59 = vsel %vm42, %v22, 0
  %v62 = vsel %vm42, %v23, 0
  %v65 = vsel %vm42, %v24, 0
  %v68 = vsel %vm42, %v25, 0
  %v71 = vsel %vm42, %v26, 0
  %v74 = vsel %vm42, %v27, 0
  %v77 = vsel %vm42, %v28, 0
  %v80 = vsel %vm42, %v29, 0
  %v83 = vsel %vm42, %v30, 0
  %v86 = vsel %vm42, %v31, 0
  %v89 = vsel %vm42, %v32, 0
  %v92 = vsel %vm42, %v33, 0
  %v95 = vsel %vm42, %v34, 0
  %v98 = vsel %vm42, %v35, 0
  %v101 = vsel %vm42, %v36, 0
  %v104 = vsel %vm42, %v37, 0
  %v107 = vsel %vm42, %v38, 0
  %v110 = vsel %vm42, %v39, 0
  %vm112 = vcmask 1044480
  %v114 = vsel %vm112, %v41, 0
  %116 = vmatprep.subr.mxu0 0.0
  %117 = vmatpush1.msra.mxu0 0.0
  %118 = vmatprep.subr.mxu0 0.0
  %119 = vmatpush1.msra.mxu0 0.0
  %120 = vmatprep.subr.mxu0 0.0
  %121 = vmatpush1.msra.mxu0 0.0
  %122 = vmatprep.subr.mxu0 0.0
  %123 = vmatpush1.msra.mxu0 0.0
  %124 = vmatprep.subr.mxu0 0.0
  %125 = vmatpush1.msra.mxu0 0.0
  %126 = vmatprep.subr.mxu0 0.0
  %127 = vmatpush1.msra.mxu0 0.0
  %128 = vmatprep.subr.mxu0 0.0
  %129 = vmatpush1.msra.mxu0 0.0
  %130 = vmatprep.subr.mxu0 0.0
  %131 = vmatpush1.msra.mxu0 0.0
  %132 = vmatprep.subr.mxu0 0.0
  %133 = vmatpush1.msra.mxu0 0.0
  %134 = vmatprep.subr.mxu0 0.0
  %135 = vmatpush1.msra.mxu0 0.0
  %136 = vmatprep.subr.mxu0 0.0
  %137 = vmatpush1.msra.mxu0 0.0
  %138 = vmatprep.subr.mxu0 0.0
  %139 = vmatpush1.msra.mxu0 0.0
  %140 = vmatprep.subr.mxu0 0.0
  %141 = vmatpush1.msra.mxu0 0.0
  %142 = vmatprep.subr.mxu0 0.0
  %143 = vmatpush1.msra.mxu0 0.0
  %144 = vmatprep.subr.mxu0 0.0
  %145 = vmatpush1.msra.mxu0 %v114
  %146 = vmatprep.subr.mxu0 0.0
  %147 = vmatpush1.msra.mxu0 %v40
  %148 = vmatprep.subr.mxu0 0.0
  %149 = vmatpush2.msra.mxu0 0.0
  %150 = vmatprep.subr.mxu0 0.0
  %151 = vmatpush2.msra.mxu0 0.0
  %152 = vmatprep.subr.mxu0 0.0
  %153 = vmatpush2.msra.mxu0 0.0
  %154 = vmatprep.subr.mxu0 0.0
  %155 = vmatpush2.msra.mxu0 0.0
  %156 = vmatprep.subr.mxu0 0.0
  %157 = vmatpush2.msra.mxu0 0.0
  %158 = vmatprep.subr.mxu0 0.0
  %159 = vmatpush2.msra.mxu0 0.0
  %160 = vmatprep.subr.mxu0 0.0
  %161 = vmatpush2.msra.mxu0 0.0
  %162 = vmatprep.subr.mxu0 0.0
  %163 = vmatpush2.msra.mxu0 0.0
  %164 = vmatprep.subr.mxu0 0.0
  %165 = vmatpush2.msra.mxu0 0.0
  %166 = vmatprep.subr.mxu0 0.0
  %167 = vmatpush2.msra.mxu0 0.0
  %168 = vmatprep.subr.mxu0 0.0
  %169 = vmatpush2.msra.mxu0 0.0
  %170 = vmatprep.subr.mxu0 0.0
  %171 = vmatpush2.msra.mxu0 0.0
  %172 = vmatprep.subr.mxu0 0.0
  %173 = vmatpush2.msra.mxu0 0.0
  %174 = vmatprep.subr.mxu0 0.0
  %175 = vmatpush2.msra.mxu0 0.0
  %176 = vmatprep.subr.mxu0 0.0
  %177 = vmatpush2.msra.mxu0 0.0
  %178 = vmatprep.subr.mxu0 0.0
  %179 = vmatpush2.msra.mxu0 0.0
  %180 = vmatprep.mubr.f32.mxu0 0.0
  %181 = vmatmul.mubr.f32.gmra.mxu0 %v44
  %v182 = vpop.f32.mrf.mxu0
  %v183 = vadd.f32 0.0, %v182
  %v184 = vpop.f32.mrf.mxu0
  %185 = vmatprep.mubr.f32.mxu0 0.0
  %186 = vmatmul.mubr.f32.gmra.mxu0 %v47
  %v187 = vpop.f32.mrf.mxu0
  %v188 = vadd.f32 0.0, %v187
  %v189 = vpop.f32.mrf.mxu0
  %190 = vmatprep.mubr.f32.mxu0 0.0
  %191 = vmatmul.mubr.f32.gmra.mxu0 %v50
  %v192 = vpop.f32.mrf.mxu0
  %v193 = vadd.f32 0.0, %v192
  %v194 = vpop.f32.mrf.mxu0
  %195 = vmatprep.mubr.f32.mxu0 0.0
  %196 = vmatmul.mubr.f32.gmra.mxu0 %v53
  %v197 = vpop.f32.mrf.mxu0
  %v198 = vadd.f32 0.0, %v197
  %v199 = vpop.f32.mrf.mxu0
  %200 = vmatprep.mubr.f32.mxu0 0.0
  %201 = vmatmul.mubr.f32.gmra.mxu0 %v56
  %v202 = vpop.f32.mrf.mxu0
  %v203 = vadd.f32 0.0, %v202
  %v204 = vpop.f32.mrf.mxu0
  %205 = vmatprep.mubr.f32.mxu0 0.0
  %206 = vmatmul.mubr.f32.gmra.mxu0 %v59
  %v207 = vpop.f32.mrf.mxu0
  %v208 = vadd.f32 0.0, %v207
  %v209 = vpop.f32.mrf.mxu0
  %210 = vmatprep.mubr.f32.mxu0 0.0
  %211 = vmatmul.mubr.f32.gmra.mxu0 %v62
  %v212 = vpop.f32.mrf.mxu0
  %v213 = vadd.f32 0.0, %v212
  %v214 = vpop.f32.mrf.mxu0
  %215 = vmatprep.mubr.f32.mxu0 0.0
  %216 = vmatmul.mubr.f32.gmra.mxu0 %v65
  %v217 = vpop.f32.mrf.mxu0
  %v218 = vadd.f32 0.0, %v217
  %v219 = vpop.f32.mrf.mxu0
  %220 = vmatprep.mubr.f32.mxu0 0.0
  %221 = vmatmul.mubr.f32.gmra.mxu0 %v68
  %v222 = vpop.f32.mrf.mxu0
  %v223 = vadd.f32 0.0, %v222
  %v224 = vpop.f32.mrf.mxu0
  %225 = vmatprep.mubr.f32.mxu0 0.0
  %226 = vmatmul.mubr.f32.gmra.mxu0 %v71
  %v227 = vpop.f32.mrf.mxu0
  %v228 = vadd.f32 0.0, %v227
  %v229 = vpop.f32.mrf.mxu0
  %230 = vmatprep.mubr.f32.mxu0 0.0
  %231 = vmatmul.mubr.f32.gmra.mxu0 %v74
  %v232 = vpop.f32.mrf.mxu0
  %v233 = vadd.f32 0.0, %v232
  %v234 = vpop.f32.mrf.mxu0
  %235 = vmatprep.mubr.f32.mxu0 0.0
  %236 = vmatmul.mubr.f32.gmra.mxu0 %v77
  %v237 = vpop.f32.mrf.mxu0
  %v238 = vadd.f32 0.0, %v237
  %v239 = vpop.f32.mrf.mxu0
  %240 = vmatprep.mubr.f32.mxu0 0.0
  %241 = vmatmul.mubr.f32.gmra.mxu0 %v80
  %v242 = vpop.f32.mrf.mxu0
  %v243 = vadd.f32 0.0, %v242
  %v244 = vpop.f32.mrf.mxu0
  %245 = vmatprep.mubr.f32.mxu0 0.0
  %246 = vmatmul.mubr.f32.gmra.mxu0 %v83
  %v247 = vpop.f32.mrf.mxu0
  %v248 = vadd.f32 0.0, %v247
  %v249 = vpop.f32.mrf.mxu0
  %250 = vmatprep.mubr.f32.mxu0 0.0
  %251 = vmatmul.mubr.f32.gmra.mxu0 %v86
  %v252 = vpop.f32.mrf.mxu0
  %v253 = vadd.f32 0.0, %v252
  %v254 = vpop.f32.mrf.mxu0
  %255 = vmatprep.mubr.f32.mxu0 0.0
  %256 = vmatmul.mubr.f32.gmra.mxu0 %v89
  %v257 = vpop.f32.mrf.mxu0
  %v258 = vadd.f32 0.0, %v257
  %v259 = vpop.f32.mrf.mxu0
  %260 = vmatprep.mubr.f32.mxu0 0.0
  %261 = vmatmul.mubr.f32.gmra.mxu0 %v92
  %v262 = vpop.f32.mrf.mxu0
  %v263 = vadd.f32 0.0, %v262
  %v264 = vpop.f32.mrf.mxu0
  %265 = vmatprep.mubr.f32.mxu0 0.0
  %266 = vmatmul.mubr.f32.gmra.mxu0 %v95
  %v267 = vpop.f32.mrf.mxu0
  %v268 = vadd.f32 0.0, %v267
  %v269 = vpop.f32.mrf.mxu0
  %270 = vmatprep.mubr.f32.mxu0 0.0
  %271 = vmatmul.mubr.f32.gmra.mxu0 %v98
  %v272 = vpop.f32.mrf.mxu0
  %v273 = vadd.f32 0.0, %v272
  %v274 = vpop.f32.mrf.mxu0
  %275 = vmatprep.mubr.f32.mxu0 0.0
  %276 = vmatmul.mubr.f32.gmra.mxu0 %v101
  %v277 = vpop.f32.mrf.mxu0
  %v278 = vadd.f32 0.0, %v277
  %v279 = vpop.f32.mrf.mxu0
  %280 = vmatprep.mubr.f32.mxu0 0.0
  %281 = vmatmul.mubr.f32.gmra.mxu0 %v104
  %v282 = vpop.f32.mrf.mxu0
  %v283 = vadd.f32 0.0, %v282
  %v284 = vpop.f32.mrf.mxu0
  %285 = vmatprep.mubr.f32.mxu0 0.0
  %286 = vmatmul.mubr.f32.gmra.mxu0 %v107
  %v287 = vpop.f32.mrf.mxu0
  %v288 = vadd.f32 0.0, %v287
  %v289 = vpop.f32.mrf.mxu0
  %290 = vmatprep.mubr.f32.mxu0 0.0
  %291 = vmatmul.mubr.f32.gmra.mxu0 %v110
  %v292 = vpop.f32.mrf.mxu0
  %v293 = vadd.f32 0.0, %v292
  %v294 = vpop.f32.mrf.mxu0
  %295 = vdwg.mxu0
  %v296 = vmax.f32 %v183, 0.0
  %v297 = vmax.f32 %v188, 0.0
  %v298 = vmax.f32 %v193, 0.0
  %v299 = vmax.f32 %v198, 0.0
  %v300 = vmax.f32 %v203, 0.0
  %v301 = vmax.f32 %v208, 0.0
  %v302 = vmax.f32 %v213, 0.0
  %v303 = vmax.f32 %v218, 0.0
  %v304 = vmax.f32 %v223, 0.0
  %v305 = vmax.f32 %v228, 0.0
  %v306 = vmax.f32 %v233, 0.0
  %v307 = vmax.f32 %v238, 0.0
  %v308 = vmax.f32 %v243, 0.0
  %v309 = vmax.f32 %v248, 0.0
  %v310 = vmax.f32 %v253, 0.0
  %v311 = vmax.f32 %v258, 0.0
  %v312 = vmax.f32 %v263, 0.0
  %v313 = vmax.f32 %v268, 0.0
  %v314 = vmax.f32 %v273, 0.0
  %v315 = vmax.f32 %v278, 0.0
  %v316 = vmax.f32 %v283, 0.0
  %v317 = vmax.f32 %v288, 0.0
  %v318 = vmax.f32 %v293, 0.0
  %v319 = vld [vmem:[%s2] sm:$0xff]
  %v320 = vld [vmem:[%s2 + $0x8] sm:$0xff]
  %v321 = vld [vmem:[%s2 + $0x10] sm:$0xff]
  %v322 = vld [vmem:[%s2 + $0x18] sm:$0xff]
  %v323 = vld [vmem:[%s2 + $0x20] sm:$0xff]
  %v324 = vld [vmem:[%s2 + $0x28] sm:$0xff]
  %v325 = vld [vmem:[%s2 + $0x30] sm:$0xff]
  %v326 = vld [vmem:[%s2 + $0x38] sm:$0xff]
  %v327 = vld [vmem:[%s2 + $0x40] sm:$0xff]
  %v328 = vld [vmem:[%s2 + $0x48] sm:$0xff]
  %v329 = vld [vmem:[%s2 + $0x50] sm:$0xff]
  %v330 = vld [vmem:[%s2 + $0x58] sm:$0xff]
  %v331 = vld [vmem:[%s2 + $0x60] sm:$0xff]
  %v332 = vld [vmem:[%s2 + $0x68] sm:$0xff]
  %v333 = vld [vmem:[%s2 + $0x70] sm:$0xff]
  %v334 = vld [vmem:[%s2 + $0x78] sm:$0xff]
  %v335 = vld [vmem:[%s3] sm:$0xff]
  %v336 = vld [vmem:[%s3 + $0x8] sm:$0xff]
  %v337 = vld [vmem:[%s3 + $0x10] sm:$0xff]
  %v338 = vld [vmem:[%s3 + $0x18] sm:$0xff]
  %v339 = vld [vmem:[%s3 + $0x20] sm:$0xff]
  %v340 = vld [vmem:[%s3 + $0x28] sm:$0xff]
  %v341 = vld [vmem:[%s3 + $0x30] sm:$0xff]
  %v342 = vld [vmem:[%s3 + $0x38] sm:$0xff]
  %v343 = vld [vmem:[%s3 + $0x40] sm:$0xff]
  %v344 = vld [vmem:[%s3 + $0x48] sm:$0xff]
  %v345 = vld [vmem:[%s3 + $0x50] sm:$0xff]
  %v346 = vld [vmem:[%s3 + $0x58] sm:$0xff]
  %v347 = vld [vmem:[%s3 + $0x60] sm:$0xff]
  %v348 = vld [vmem:[%s3 + $0x68] sm:$0xff]
  %v349 = vld [vmem:[%s3 + $0x70] sm:$0xff]
  %v350 = vld [vmem:[%s3 + $0x78] sm:$0xff]
  %v351 = vld [vmem:[%s3 + $0x80] sm:$0xff]
  %v352 = vld [vmem:[%s3 + $0x88] sm:$0xff]
  %v353 = vld [vmem:[%s3 + $0x90] sm:$0xff]
  %v354 = vld [vmem:[%s3 + $0x98] sm:$0xff]
  %v355 = vld [vmem:[%s3 + $0xa0] sm:$0xff]
  %v356 = vld [vmem:[%s3 + $0xa8] sm:$0xff]
  %v357 = vld [vmem:[%s3 + $0xb0] sm:$0xff]
  %358 = vmatprep.subr.mxu0 0.0
  %359 = vmatpush1.msra.mxu0 %v334
  %360 = vmatprep.subr.mxu0 0.0
  %361 = vmatpush1.msra.mxu0 %v333
  %362 = vmatprep.subr.mxu0 0.0
  %363 = vmatpush1.msra.mxu0 %v332
  %364 = vmatprep.subr.mxu0 0.0
  %365 = vmatpush1.msra.mxu0 %v331
  %366 = vmatprep.subr.mxu0 0.0
  %367 = vmatpush1.msra.mxu0 %v330
  %368 = vmatprep.subr.mxu0 0.0
  %369 = vmatpush1.msra.mxu0 %v329
  %370 = vmatprep.subr.mxu0 0.0
  %371 = vmatpush1.msra.mxu0 %v328
  %372 = vmatprep.subr.mxu0 0.0
  %373 = vmatpush1.msra.mxu0 %v327
  %374 = vmatprep.subr.mxu0 0.0
  %375 = vmatpush1.msra.mxu0 %v326
  %376 = vmatprep.subr.mxu0 0.0
  %377 = vmatpush1.msra.mxu0 %v325
  %378 = vmatprep.subr.mxu0 0.0
  %379 = vmatpush1.msra.mxu0 %v324
  %380 = vmatprep.subr.mxu0 0.0
  %381 = vmatpush1.msra.mxu0 %v323
  %382 = vmatprep.subr.mxu0 0.0
  %383 = vmatpush1.msra.mxu0 %v322
  %384 = vmatprep.subr.mxu0 0.0
  %385 = vmatpush1.msra.mxu0 %v321
  %386 = vmatprep.subr.mxu0 0.0
  %387 = vmatpush1.msra.mxu0 %v320
  %388 = vmatprep.subr.mxu0 0.0
  %389 = vmatpush1.msra.mxu0 %v319
  %390 = vmatprep.subr.mxu0 0.0
  %391 = vmatpush2.msra.mxu0 0.0
  %392 = vmatprep.subr.mxu0 0.0
  %393 = vmatpush2.msra.mxu0 0.0
  %394 = vmatprep.subr.mxu0 0.0
  %395 = vmatpush2.msra.mxu0 0.0
  %396 = vmatprep.subr.mxu0 0.0
  %397 = vmatpush2.msra.mxu0 0.0
  %398 = vmatprep.subr.mxu0 0.0
  %399 = vmatpush2.msra.mxu0 0.0
  %400 = vmatprep.subr.mxu0 0.0
  %401 = vmatpush2.msra.mxu0 0.0
  %402 = vmatprep.subr.mxu0 0.0
  %403 = vmatpush2.msra.mxu0 0.0
  %404 = vmatprep.subr.mxu0 0.0
  %405 = vmatpush2.msra.mxu0 0.0
  %406 = vmatprep.subr.mxu0 0.0
  %407 = vmatpush2.msra.mxu0 0.0
  %408 = vmatprep.subr.mxu0 0.0
  %409 = vmatpush2.msra.mxu0 0.0
  %410 = vmatprep.subr.mxu0 0.0
  %411 = vmatpush2.msra.mxu0 0.0
  %412 = vmatprep.subr.mxu0 0.0
  %413 = vmatpush2.msra.mxu0 0.0
  %414 = vmatprep.subr.mxu0 0.0
  %415 = vmatpush2.msra.mxu0 0.0
  %416 = vmatprep.subr.mxu0 0.0
  %417 = vmatpush2.msra.mxu0 0.0
  %418 = vmatprep.subr.mxu0 0.0
  %419 = vmatpush2.msra.mxu0 0.0
  %420 = vmatprep.subr.mxu0 0.0
  %421 = vmatpush2.msra.mxu0 0.0
  %422 = vmatprep.mubr.f32.mxu0 0.0
  %423 = vmatmul.mubr.f32.gmra.mxu0 %v296
  %v424 = vpop.f32.mrf.mxu0
  %v425 = vadd.f32 %v335, %v424
  %v426 = vpop.f32.mrf.mxu0
  %427 = vmatprep.mubr.f32.mxu0 0.0
  %428 = vmatmul.mubr.f32.gmra.mxu0 %v297
  %v429 = vpop.f32.mrf.mxu0
  %v430 = vadd.f32 %v336, %v429
  %v431 = vpop.f32.mrf.mxu0
  %432 = vmatprep.mubr.f32.mxu0 0.0
  %433 = vmatmul.mubr.f32.gmra.mxu0 %v298
  %v434 = vpop.f32.mrf.mxu0
  %v435 = vadd.f32 %v337, %v434
  %v436 = vpop.f32.mrf.mxu0
  %437 = vmatprep.mubr.f32.mxu0 0.0
  %438 = vmatmul.mubr.f32.gmra.mxu0 %v299
  %v439 = vpop.f32.mrf.mxu0
  %v440 = vadd.f32 %v338, %v439
  %v441 = vpop.f32.mrf.mxu0
  %442 = vmatprep.mubr.f32.mxu0 0.0
  %443 = vmatmul.mubr.f32.gmra.mxu0 %v300
  %v444 = vpop.f32.mrf.mxu0
  %v445 = vadd.f32 %v339, %v444
  %v446 = vpop.f32.mrf.mxu0
  %447 = vmatprep.mubr.f32.mxu0 0.0
  %448 = vmatmul.mubr.f32.gmra.mxu0 %v301
  %v449 = vpop.f32.mrf.mxu0
  %v450 = vadd.f32 %v340, %v449
  %v451 = vpop.f32.mrf.mxu0
  %452 = vmatprep.mubr.f32.mxu0 0.0
  %453 = vmatmul.mubr.f32.gmra.mxu0 %v302
  %v454 = vpop.f32.mrf.mxu0
  %v455 = vadd.f32 %v341, %v454
  %v456 = vpop.f32.mrf.mxu0
  %457 = vmatprep.mubr.f32.mxu0 0.0
  %458 = vmatmul.mubr.f32.gmra.mxu0 %v303
  %v459 = vpop.f32.mrf.mxu0
  %v460 = vadd.f32 %v342, %v459
  %v461 = vpop.f32.mrf.mxu0
  %462 = vmatprep.mubr.f32.mxu0 0.0
  %463 = vmatmul.mubr.f32.gmra.mxu0 %v304
  %v464 = vpop.f32.mrf.mxu0
  %v465 = vadd.f32 %v343, %v464
  %v466 = vpop.f32.mrf.mxu0
  %467 = vmatprep.mubr.f32.mxu0 0.0
  %468 = vmatmul.mubr.f32.gmra.mxu0 %v305
  %v469 = vpop.f32.mrf.mxu0
  %v470 = vadd.f32 %v344, %v469
  %v471 = vpop.f32.mrf.mxu0
  %472 = vmatprep.mubr.f32.mxu0 0.0
  %473 = vmatmul.mubr.f32.gmra.mxu0 %v306
  %v474 = vpop.f32.mrf.mxu0
  %v475 = vadd.f32 %v345, %v474
  %v476 = vpop.f32.mrf.mxu0
  %477 = vmatprep.mubr.f32.mxu0 0.0
  %478 = vmatmul.mubr.f32.gmra.mxu0 %v307
  %v479 = vpop.f32.mrf.mxu0
  %v480 = vadd.f32 %v346, %v479
  %v481 = vpop.f32.mrf.mxu0
  %482 = vmatprep.mubr.f32.mxu0 0.0
  %483 = vmatmul.mubr.f32.gmra.mxu0 %v308
  %v484 = vpop.f32.mrf.mxu0
  %v485 = vadd.f32 %v347, %v484
  %v486 = vpop.f32.mrf.mxu0
  %487 = vmatprep.mubr.f32.mxu0 0.0
  %488 = vmatmul.mubr.f32.gmra.mxu0 %v309
  %v489 = vpop.f32.mrf.mxu0
  %v490 = vadd.f32 %v348, %v489
  %v491 = vpop.f32.mrf.mxu0
  %492 = vmatprep.mubr.f32.mxu0 0.0
  %493 = vmatmul.mubr.f32.gmra.mxu0 %v310
  %v494 = vpop.f32.mrf.mxu0
  %v495 = vadd.f32 %v349, %v494
  %v496 = vpop.f32.mrf.mxu0
  %497 = vmatprep.mubr.f32.mxu0 0.0
  %498 = vmatmul.mubr.f32.gmra.mxu0 %v311
  %v499 = vpop.f32.mrf.mxu0
  %v500 = vadd.f32 %v350, %v499
  %v501 = vpop.f32.mrf.mxu0
  %502 = vmatprep.mubr.f32.mxu0 0.0
  %503 = vmatmul.mubr.f32.gmra.mxu0 %v312
  %v504 = vpop.f32.mrf.mxu0
  %v505 = vadd.f32 %v351, %v504
  %v506 = vpop.f32.mrf.mxu0
  %507 = vmatprep.mubr.f32.mxu0 0.0
  %508 = vmatmul.mubr.f32.gmra.mxu0 %v313
  %v509 = vpop.f32.mrf.mxu0
  %v510 = vadd.f32 %v352, %v509
  %v511 = vpop.f32.mrf.mxu0
  %512 = vmatprep.mubr.f32.mxu0 0.0
  %513 = vmatmul.mubr.f32.gmra.mxu0 %v314
  %v514 = vpop.f32.mrf.mxu0
  %v515 = vadd.f32 %v353, %v514
  %v516 = vpop.f32.mrf.mxu0
  %517 = vmatprep.mubr.f32.mxu0 0.0
  %518 = vmatmul.mubr.f32.gmra.mxu0 %v315
  %v519 = vpop.f32.mrf.mxu0
  %v520 = vadd.f32 %v354, %v519
  %v521 = vpop.f32.mrf.mxu0
  %522 = vmatprep.mubr.f32.mxu0 0.0
  %523 = vmatmul.mubr.f32.gmra.mxu0 %v316
  %v524 = vpop.f32.mrf.mxu0
  %v525 = vadd.f32 %v355, %v524
  %v526 = vpop.f32.mrf.mxu0
  %527 = vmatprep.mubr.f32.mxu0 0.0
  %528 = vmatmul.mubr.f32.gmra.mxu0 %v317
  %v529 = vpop.f32.mrf.mxu0
  %v530 = vadd.f32 %v356, %v529
  %v531 = vpop.f32.mrf.mxu0
  %532 = vmatprep.mubr.f32.mxu0 0.0
  %533 = vmatmul.mubr.f32.gmra.mxu0 %v318
  %v534 = vpop.f32.mrf.mxu0
  %v535 = vadd.f32 %v357, %v534
  %v536 = vpop.f32.mrf.mxu0
  %537 = vdwg.mxu0
  %538 = vst [vmem:[%s4] sm:$0xff] %v425
  %539 = vst [vmem:[%s4 + $0x8] sm:$0xff] %v430
  %540 = vst [vmem:[%s4 + $0x10] sm:$0xff] %v435
  %541 = vst [vmem:[%s4 + $0x18] sm:$0xff] %v440
  %542 = vst [vmem:[%s4 + $0x20] sm:$0xff] %v445
  %543 = vst [vmem:[%s4 + $0x28] sm:$0xff] %v450
  %544 = vst [vmem:[%s4 + $0x30] sm:$0xff] %v455
  %545 = vst [vmem:[%s4 + $0x38] sm:$0xff] %v460
  %546 = vst [vmem:[%s4 + $0x40] sm:$0xff] %v465
  %547 = vst [vmem:[%s4 + $0x48] sm:$0xff] %v470
  %548 = vst [vmem:[%s4 + $0x50] sm:$0xff] %v475
  %549 = vst [vmem:[%s4 + $0x58] sm:$0xff] %v480
  %550 = vst [vmem:[%s4 + $0x60] sm:$0xff] %v485
  %551 = vst [vmem:[%s4 + $0x68] sm:$0xff] %v490
  %552 = vst [vmem:[%s4 + $0x70] sm:$0xff] %v495
  %553 = vst [vmem:[%s4 + $0x78] sm:$0xff] %v500
  %554 = vst [vmem:[%s4 + $0x80] sm:$0xff] %v505
  %555 = vst [vmem:[%s4 + $0x88] sm:$0xff] %v510
  %556 = vst [vmem:[%s4 + $0x90] sm:$0xff] %v515
  %557 = vst [vmem:[%s4 + $0x98] sm:$0xff] %v520
  %558 = vst [vmem:[%s4 + $0xa0] sm:$0xff] %v525
  %559 = vst [vmem:[%s4 + $0xa8] sm:$0xff] %v530
  %560 = vst [vmem:[%s4 + $0xb0] sm:$0xff] %v535
  // Predicated region
  $region18: #{input_feature_forward.1} parent=0 // pred_check
    _
  $region19: #{input_feature_forward.1} parent=0 // pred_check_branch
    %562 = sbr.rel (0) target = $region21
  $region20: #{input_feature_forward.1} parent=0 // pred_region
    _
  $region21: #{input_feature_forward.1} parent=0 // pred_fallthru
    _
  // Predicated region
  $region22: #{input_feature_forward.1} parent=0 // pred_check
    _
  $region23: #{input_feature_forward.1} parent=0 // pred_check_branch
    %564 = sbr.rel (0) target = $region25
  $region24: #{input_feature_forward.1} parent=0 // pred_region
    _
  $region25: #{input_feature_forward.1} parent=0 // pred_fallthru
    _

</llo_original>
